<compile_context>
chip_gen: v5e
topology: v5e:2x2
jax: 0.10.0
libtpu: 0.0.40
codegen_flags: <defaults>
</compile_context>

<pallas_src>
import functools

import jax
import jax.numpy as jnp
from jax.experimental import pallas as pl
from jax.experimental.pallas import tpu as pltpu


# ---------------------------------------------------------------------------
# Stage 1: fused Q/K/V projections, batch folded into the MXU M dimension.
# ---------------------------------------------------------------------------
def _qkv_proj_kernel(x_ref, wq_ref, wk_ref, wv_ref, q_ref, k_ref, v_ref):
    x = x_ref[...]  # (tm, dim), native dtype straight into the MXU
    q_ref[...] = jnp.dot(x, wq_ref[...],
                         preferred_element_type=jnp.float32).astype(q_ref.dtype)
    k_ref[...] = jnp.dot(x, wk_ref[...],
                         preferred_element_type=jnp.float32).astype(k_ref.dtype)
    v_ref[...] = jnp.dot(x, wv_ref[...],
                         preferred_element_type=jnp.float32).astype(v_ref.dtype)


def _qkv_projection(x2d, w_q, w_k, w_v):
    M, dim = x2d.shape
    dim_inner = w_q.shape[1]

    # Row tile: multiple of 8, as large as reasonable so the MXU M dim is full.
    Mp = ((M + 7) // 8) * 8
    tm = min(512, Mp)
    Mp = ((Mp + tm - 1) // tm) * tm
    if Mp != M:
        x2d = jnp.pad(x2d, ((0, Mp - M), (0, 0)))

    out_sds = jax.ShapeDtypeStruct((Mp, dim_inner), x2d.dtype)
    q, k, v = pl.pallas_call(
        _qkv_proj_kernel,
        out_shape=(out_sds, out_sds, out_sds),
        grid_spec=pltpu.PrefetchScalarGridSpec(
            num_scalar_prefetch=0,
            grid=(Mp // tm,),
            in_specs=[
                pl.BlockSpec((tm, dim), lambda i: (i, 0)),
                pl.BlockSpec((dim, dim_inner), lambda i: (0, 0)),
                pl.BlockSpec((dim, dim_inner), lambda i: (0, 0)),
                pl.BlockSpec((dim, dim_inner), lambda i: (0, 0)),
            ],
            out_specs=[
                pl.BlockSpec((tm, dim_inner), lambda i: (i, 0)),
                pl.BlockSpec((tm, dim_inner), lambda i: (i, 0)),
                pl.BlockSpec((tm, dim_inner), lambda i: (i, 0)),
            ],
        ),
        compiler_params=pltpu.CompilerParams(dimension_semantics=("parallel",)),
    )(x2d, w_q, w_k, w_v)
    return q[:M], k[:M], v[:M]


# ---------------------------------------------------------------------------
# Stage 2: per-(batch, head) attention + accumulated output projection.
# ---------------------------------------------------------------------------
def _attn_kernel(q_ref, k_ref, v_ref, wo_ref, o_ref, acc_ref, *, scale):
    h = pl.program_id(1)

    @pl.when(h == 0)
    def _init():
        acc_ref[...] = jnp.zeros_like(acc_ref)

    q = q_ref[0, 0]          # (n, d), native dtype
    k = k_ref[0, 0]          # (n, d)
    v = v_ref[0, 0]          # (n, d)
    wo = wo_ref[0]           # (d, dim)

    # q @ k^T without materializing a transpose; accumulate in f32.
    sim = jax.lax.dot_general(
        q, k, dimension_numbers=(((1,), (1,)), ((), ())),
        preferred_element_type=jnp.float32) * scale

    # Numerically-stable softmax in f32; the reciprocal goes to the EUP.
    sim = sim - jnp.max(sim, axis=-1, keepdims=True)
    p = jnp.exp(sim)
    l = jnp.sum(p, axis=-1, keepdims=True)
    attn = p * pl.reciprocal(l, approx=True)

    out_h = jnp.dot(attn.astype(v.dtype), v,
                    preferred_element_type=jnp.float32)            # (n, d)
    acc_ref[...] += jnp.dot(out_h.astype(wo.dtype), wo,
                            preferred_element_type=jnp.float32)    # (n, dim)

    @pl.when(h == pl.num_programs(1) - 1)
    def _finalize():
        o_ref[0] = acc_ref[...].astype(o_ref.dtype)


@functools.partial(jax.jit, static_argnames=("heads", "dim_head"))
def attention_forward(x, w_q, w_kv, w_out, *, heads, dim_head):
    b, n, dim = x.shape
    dim_inner = heads * dim_head
    assert w_q.shape == (dim, dim_inner)
    assert w_kv.shape == (dim, 2 * dim_inner)
    assert w_out.shape == (dim_inner, dim)

    # Split the combined KV weight outside the kernel (no in-kernel lane slice).
    w_k = w_kv[:, :dim_inner]
    w_v = w_kv[:, dim_inner:]

    # Stage 1: projections with b*n rows feeding the MXU in one pass.
    q2d, k2d, v2d = _qkv_projection(x.reshape(b * n, dim), w_q, w_k, w_v)

    # Wrapper-side layout plumbing: (b*n, h*d) -> (b, h, n, d); the stage-2
    # BlockSpec DMA then delivers per-head tiles directly.
    def to_heads(t):
        return t.reshape(b, n, heads, dim_head).transpose(0, 2, 1, 3)

    qh, kh, vh = map(to_heads, (q2d, k2d, v2d))
    wo_h = w_out.reshape(heads, dim_head, dim)   # row split: no transpose needed

    kernel = functools.partial(_attn_kernel, scale=dim_head ** (-0.5))

    return pl.pallas_call(
        kernel,
        out_shape=jax.ShapeDtypeStruct((b, n, dim), x.dtype),
        grid_spec=pltpu.PrefetchScalarGridSpec(
            num_scalar_prefetch=0,
            grid=(b, heads),   # heads = reduction axis, kept last
            in_specs=[
                pl.BlockSpec((1, 1, n, dim_head), lambda bi, hi: (bi, hi, 0, 0)),
                pl.BlockSpec((1, 1, n, dim_head), lambda bi, hi: (bi, hi, 0, 0)),
                pl.BlockSpec((1, 1, n, dim_head), lambda bi, hi: (bi, hi, 0, 0)),
                pl.BlockSpec((1, dim_head, dim), lambda bi, hi: (hi, 0, 0)),
            ],
            out_specs=pl.BlockSpec((1, n, dim), lambda bi, hi: (bi, 0, 0)),
            scratch_shapes=[pltpu.VMEM((n, dim), jnp.float32)],
        ),
        compiler_params=pltpu.CompilerParams(
            dimension_semantics=("parallel", "arbitrary")),
    )(qh, kh, vh, wo_h)


def _reference(x, w_q, w_kv, w_out, *, heads, dim_head):
    """Pure-JAX reference matching the PyTorch module semantics."""
    b, n, dim = x.shape
    dim_inner = heads * dim_head
    scale = dim_head ** (-0.5)

    q = x @ w_q
    kv = x @ w_kv
    k, v = kv[..., :dim_inner], kv[..., dim_inner:]

    def split_heads(t):
        return t.reshape(b, n, heads, dim_head).transpose(0, 2, 1, 3)

    q, k, v = map(split_heads, (q, k, v))
    sim = jnp.einsum('bhid,bhjd->bhij', q, k) * scale
    attn = jax.nn.softmax(sim, axis=-1)
    out = jnp.einsum('bhij,bhjd->bhid', attn, v)
    out = out.transpose(0, 2, 1, 3).reshape(b, n, dim_inner)
    return out @ w_out


if __name__ == "__main__":
    # Small shapes consistent with the module: dim=32, heads=4, dim_head=16.
    batch, seq, dim = 2, 8, 32
    heads, dim_head = 4, 16
    dim_inner = heads * dim_head

    key = jax.random.PRNGKey(0)
    kx, kq, kkv, ko = jax.random.split(key, 4)

    x = jax.random.normal(kx, (batch, seq, dim), dtype=jnp.float32)

    # Deterministic parameter init (uniform, Kaiming-like bound as in nn.Linear).
    def init_linear(k, fan_in, fan_out):
        bound = 1.0 / (fan_in ** 0.5)
        return jax.random.uniform(k, (fan_in, fan_out), jnp.float32, -bound, bound)

    w_q = init_linear(kq, dim, dim_inner)          # to_q   (bias=False)
    w_kv = init_linear(kkv, dim, 2 * dim_inner)    # to_kv  (bias=False)
    w_out = init_linear(ko, dim_inner, dim)        # to_out (bias=False)

    out = attention_forward(x, w_q, w_kv, w_out, heads=heads, dim_head=dim_head)
    out = jax.block_until_ready(out)

    ref = _reference(x, w_q, w_kv, w_out, heads=heads, dim_head=dim_head)
    # Slightly relaxed tolerance: softmax normalization uses the EUP approximate
    # reciprocal (pl.reciprocal(..., approx=True)).
    if not jnp.allclose(out, ref, atol=2e-3, rtol=2e-3):
        err = float(jnp.max(jnp.abs(out - ref)))
        raise AssertionError(f"Pallas kernel output does not match reference (max |err|={err})")

    print("KERNEL_OK")
</pallas_src>

<mosaic_0001>
module attributes {stable_mosaic.version = 11 : i64} {
  func.func @_qkv_proj_kernel(%arg0: i32, %arg1: memref<16x32xf32, #tpu.memory_space<vmem>>, %arg2: memref<32x64xf32, #tpu.memory_space<vmem>>, %arg3: memref<32x64xf32, #tpu.memory_space<vmem>>, %arg4: memref<32x64xf32, #tpu.memory_space<vmem>>, %arg5: memref<16x64xf32, #tpu.memory_space<vmem>>, %arg6: memref<16x64xf32, #tpu.memory_space<vmem>>, %arg7: memref<16x64xf32, #tpu.memory_space<vmem>>) attributes {dimension_semantics = [#tpu.dimension_semantics<parallel>], iteration_bounds = array<i64: 1>, scalar_prefetch = 0 : i64, scratch_operands = 0 : i64, tpu.core_type = #tpu.core_type<tc>, window_params = [{transform_indices = @transform_0, window_bounds = array<i64: 16, 32>}, {pipeline_mode = #tpu.pipeline_mode<synchronous>, transform_indices = @transform_1, window_bounds = array<i64: 32, 64>}, {pipeline_mode = #tpu.pipeline_mode<synchronous>, transform_indices = @transform_2, window_bounds = array<i64: 32, 64>}, {pipeline_mode = #tpu.pipeline_mode<synchronous>, transform_indices = @transform_3, window_bounds = array<i64: 32, 64>}, {transform_indices = @transform_4, window_bounds = array<i64: 16, 64>}, {transform_indices = @transform_5, window_bounds = array<i64: 16, 64>}, {transform_indices = @transform_6, window_bounds = array<i64: 16, 64>}]} {
    %c0 = arith.constant 0 : index
    %c0_0 = arith.constant 0 : index
    %0 = vector.load %arg1[%c0, %c0_0] : memref<16x32xf32, #tpu.memory_space<vmem>>, vector<16x32xf32>
    %c0_1 = arith.constant 0 : index
    %c0_2 = arith.constant 0 : index
    %1 = vector.load %arg2[%c0_1, %c0_2] : memref<32x64xf32, #tpu.memory_space<vmem>>, vector<32x64xf32>
    %cst = arith.constant dense<0.000000e+00> : vector<16x64xf32>
    %2 = tpu.matmul %0, %1, %cst {dimension_numbers = #tpu.dot_dimension_numbers<[1], [0], [0], [1], [0, 0, 1, 1], [], []>} : vector<16x32xf32>, vector<32x64xf32>, vector<16x64xf32> -> vector<16x64xf32>
    %c0_3 = arith.constant 0 : index
    %c0_4 = arith.constant 0 : index
    %3 = vector.load %arg5[%c0_3, %c0_4] : memref<16x64xf32, #tpu.memory_space<vmem>>, vector<16x64xf32>
    tpu.vector_store %arg5[%c0_3, %c0_4], %2 {strides = array<i32>} : memref<16x64xf32, #tpu.memory_space<vmem>>, vector<16x64xf32>,
    %c0_5 = arith.constant 0 : index
    %c0_6 = arith.constant 0 : index
    %4 = vector.load %arg3[%c0_5, %c0_6] : memref<32x64xf32, #tpu.memory_space<vmem>>, vector<32x64xf32>
    %cst_7 = arith.constant dense<0.000000e+00> : vector<16x64xf32>
    %5 = tpu.matmul %0, %4, %cst_7 {dimension_numbers = #tpu.dot_dimension_numbers<[1], [0], [0], [1], [0, 0, 1, 1], [], []>} : vector<16x32xf32>, vector<32x64xf32>, vector<16x64xf32> -> vector<16x64xf32>
    %c0_8 = arith.constant 0 : index
    %c0_9 = arith.constant 0 : index
    %6 = vector.load %arg6[%c0_8, %c0_9] : memref<16x64xf32, #tpu.memory_space<vmem>>, vector<16x64xf32>
    tpu.vector_store %arg6[%c0_8, %c0_9], %5 {strides = array<i32>} : memref<16x64xf32, #tpu.memory_space<vmem>>, vector<16x64xf32>,
    %c0_10 = arith.constant 0 : index
    %c0_11 = arith.constant 0 : index
    %7 = vector.load %arg4[%c0_10, %c0_11] : memref<32x64xf32, #tpu.memory_space<vmem>>, vector<32x64xf32>
    %cst_12 = arith.constant dense<0.000000e+00> : vector<16x64xf32>
    %8 = tpu.matmul %0, %7, %cst_12 {dimension_numbers = #tpu.dot_dimension_numbers<[1], [0], [0], [1], [0, 0, 1, 1], [], []>} : vector<16x32xf32>, vector<32x64xf32>, vector<16x64xf32> -> vector<16x64xf32>
    %c0_13 = arith.constant 0 : index
    %c0_14 = arith.constant 0 : index
    %9 = vector.load %arg7[%c0_13, %c0_14] : memref<16x64xf32, #tpu.memory_space<vmem>>, vector<16x64xf32>
    tpu.vector_store %arg7[%c0_13, %c0_14], %8 {strides = array<i32>} : memref<16x64xf32, #tpu.memory_space<vmem>>, vector<16x64xf32>,
    return
  }
  func.func @transform_0(%arg0: i32) -> (i32, i32) {
    %c0_i32 = arith.constant 0 : i32
    %c0_i32_0 = arith.constant 0 : i32
    return %arg0, %c0_i32 : i32, i32
  }
  func.func @transform_1(%arg0: i32) -> (i32, i32) {
    %c0_i32 = arith.constant 0 : i32
    %c0_i32_0 = arith.constant 0 : i32
    %c0_i32_1 = arith.constant 0 : i32
    return %c0_i32, %c0_i32_0 : i32, i32
  }
  func.func @transform_2(%arg0: i32) -> (i32, i32) {
    %c0_i32 = arith.constant 0 : i32
    %c0_i32_0 = arith.constant 0 : i32
    %c0_i32_1 = arith.constant 0 : i32
    return %c0_i32, %c0_i32_0 : i32, i32
  }
  func.func @transform_3(%arg0: i32) -> (i32, i32) {
    %c0_i32 = arith.constant 0 : i32
    %c0_i32_0 = arith.constant 0 : i32
    %c0_i32_1 = arith.constant 0 : i32
    return %c0_i32, %c0_i32_0 : i32, i32
  }
  func.func @transform_4(%arg0: i32) -> (i32, i32) {
    %c0_i32 = arith.constant 0 : i32
    %c0_i32_0 = arith.constant 0 : i32
    return %arg0, %c0_i32 : i32, i32
  }
  func.func @transform_5(%arg0: i32) -> (i32, i32) {
    %c0_i32 = arith.constant 0 : i32
    %c0_i32_0 = arith.constant 0 : i32
    return %arg0, %c0_i32 : i32, i32
  }
  func.func @transform_6(%arg0: i32) -> (i32, i32) {
    %c0_i32 = arith.constant 0 : i32
    %c0_i32_0 = arith.constant 0 : i32
    return %arg0, %c0_i32 : i32, i32
  }
}

module attributes {stable_mosaic.version = 11 : i64} {
  func.func @_attn_kernel(%arg0: i32, %arg1: i32, %arg2: memref<1x1x8x16xf32, #tpu.memory_space<vmem>>, %arg3: memref<1x1x8x16xf32, #tpu.memory_space<vmem>>, %arg4: memref<1x1x8x16xf32, #tpu.memory_space<vmem>>, %arg5: memref<1x16x32xf32, #tpu.memory_space<vmem>>, %arg6: memref<1x8x32xf32, #tpu.memory_space<vmem>>, %arg7: memref<8x32xf32, #tpu.memory_space<vmem>>) attributes {dimension_semantics = [#tpu.dimension_semantics<parallel>, #tpu.dimension_semantics<arbitrary>], iteration_bounds = array<i64: 2, 4>, scalar_prefetch = 0 : i64, scratch_operands = 1 : i64, tpu.core_type = #tpu.core_type<tc>, window_params = [{transform_indices = @transform_0, window_bounds = array<i64: 1, 1, 8, 16>}, {transform_indices = @transform_1, window_bounds = array<i64: 1, 1, 8, 16>}, {transform_indices = @transform_2, window_bounds = array<i64: 1, 1, 8, 16>}, {transform_indices = @transform_3, window_bounds = array<i64: 1, 16, 32>}, {transform_indices = @transform_4, window_bounds = array<i64: 1, 8, 32>}]} {
    %c0_i32 = arith.constant 0 : i32
    %0 = arith.cmpi eq, %arg1, %c0_i32 : i32
    %1 = arith.extui %0 : i1 to i32
    %c0_i32_0 = arith.constant 0 : i32
    %2 = arith.cmpi ne, %1, %c0_i32_0 : i32
    scf.if %2 {
      %cst_25 = arith.constant 0.000000e+00 : f32
      %32 = vector.broadcast %cst_25 : f32 to vector<8x32xf32>
      %c0_26 = arith.constant 0 : index
      %c0_27 = arith.constant 0 : index
      %33 = vector.load %arg7[%c0_26, %c0_27] : memref<8x32xf32, #tpu.memory_space<vmem>>, vector<8x32xf32>
      tpu.vector_store %arg7[%c0_26, %c0_27], %32 {strides = array<i32>} : memref<8x32xf32, #tpu.memory_space<vmem>>, vector<8x32xf32>,
    } else {
    }
    %c0 = arith.constant 0 : index
    %c0_1 = arith.constant 0 : index
    %c0_2 = arith.constant 0 : index
    %c0_3 = arith.constant 0 : index
    %3 = vector.load %arg2[%c0, %c0_1, %c0_2, %c0_3] : memref<1x1x8x16xf32, #tpu.memory_space<vmem>>, vector<1x1x8x16xf32>
    %4 = vector.shape_cast %3 : vector<1x1x8x16xf32> to vector<8x16xf32>
    %c0_4 = arith.constant 0 : index
    %c0_5 = arith.constant 0 : index
    %c0_6 = arith.constant 0 : index
    %c0_7 = arith.constant 0 : index
    %5 = vector.load %arg3[%c0_4, %c0_5, %c0_6, %c0_7] : memref<1x1x8x16xf32, #tpu.memory_space<vmem>>, vector<1x1x8x16xf32>
    %6 = vector.shape_cast %5 : vector<1x1x8x16xf32> to vector<8x16xf32>
    %c0_8 = arith.constant 0 : index
    %c0_9 = arith.constant 0 : index
    %c0_10 = arith.constant 0 : index
    %c0_11 = arith.constant 0 : index
    %7 = vector.load %arg4[%c0_8, %c0_9, %c0_10, %c0_11] : memref<1x1x8x16xf32, #tpu.memory_space<vmem>>, vector<1x1x8x16xf32>
    %8 = vector.shape_cast %7 : vector<1x1x8x16xf32> to vector<8x16xf32>
    %c0_12 = arith.constant 0 : index
    %c0_13 = arith.constant 0 : index
    %c0_14 = arith.constant 0 : index
    %9 = vector.load %arg5[%c0_12, %c0_13, %c0_14] : memref<1x16x32xf32, #tpu.memory_space<vmem>>, vector<1x16x32xf32>
    %10 = vector.shape_cast %9 : vector<1x16x32xf32> to vector<16x32xf32>
    %cst = arith.constant dense<0.000000e+00> : vector<8x8xf32>
    %11 = tpu.matmul %4, %6, %cst {dimension_numbers = #tpu.dot_dimension_numbers<[1], [1], [0], [0], [0, 0, 1, 0], [], []>} : vector<8x16xf32>, vector<8x16xf32>, vector<8x8xf32> -> vector<8x8xf32>
    %cst_15 = arith.constant 2.500000e-01 : f32
    %12 = vector.broadcast %cst_15 : f32 to vector<8x8xf32>
    %13 = arith.mulf %11, %12 : vector<8x8xf32>
    %cst_16 = arith.constant dense<0xFF800000> : vector<8xf32>
    %14 = vector.multi_reduction <maximumf>, %13, %cst_16 [1] : vector<8x8xf32> to vector<8xf32>
    %15 = vector.shape_cast %14 : vector<8xf32> to vector<8x1xf32>
    %16 = vector.broadcast %15 : vector<8x1xf32> to vector<8x8xf32>
    %17 = arith.subf %13, %16 : vector<8x8xf32>
    %18 = math.exp %17 : vector<8x8xf32>
    %cst_17 = arith.constant dense<0.000000e+00> : vector<8xf32>
    %19 = vector.multi_reduction <add>, %18, %cst_17 [1] : vector<8x8xf32> to vector<8xf32>
    %20 = vector.shape_cast %19 : vector<8xf32> to vector<8x1xf32>
    %21 = tpu.reciprocal %20 {approx = true} : vector<8x1xf32> -> vector<8x1xf32>
    %22 = vector.broadcast %21 : vector<8x1xf32> to vector<8x8xf32>
    %23 = arith.mulf %18, %22 : vector<8x8xf32>
    %cst_18 = arith.constant dense<0.000000e+00> : vector<8x16xf32>
    %24 = tpu.matmul %23, %8, %cst_18 {dimension_numbers = #tpu.dot_dimension_numbers<[1], [0], [0], [1], [0, 0, 1, 1], [], []>} : vector<8x8xf32>, vector<8x16xf32>, vector<8x16xf32> -> vector<8x16xf32>
    %c0_19 = arith.constant 0 : index
    %c0_20 = arith.constant 0 : index
    %25 = vector.load %arg7[%c0_19, %c0_20] : memref<8x32xf32, #tpu.memory_space<vmem>>, vector<8x32xf32>
    %cst_21 = arith.constant dense<0.000000e+00> : vector<8x32xf32>
    %26 = tpu.matmul %24, %10, %cst_21 {dimension_numbers = #tpu.dot_dimension_numbers<[1], [0], [0], [1], [0, 0, 1, 1], [], []>} : vector<8x16xf32>, vector<16x32xf32>, vector<8x32xf32> -> vector<8x32xf32>
    %27 = arith.addf %25, %26 : vector<8x32xf32>
    %c0_22 = arith.constant 0 : index
    %c0_23 = arith.constant 0 : index
    %28 = vector.load %arg7[%c0_22, %c0_23] : memref<8x32xf32, #tpu.memory_space<vmem>>, vector<8x32xf32>
    tpu.vector_store %arg7[%c0_22, %c0_23], %27 {strides = array<i32>} : memref<8x32xf32, #tpu.memory_space<vmem>>, vector<8x32xf32>,
    %c3_i32 = arith.constant 3 : i32
    %29 = arith.cmpi eq, %arg1, %c3_i32 : i32
    %30 = arith.extui %29 : i1 to i32
    %c0_i32_24 = arith.constant 0 : i32
    %31 = arith.cmpi ne, %30, %c0_i32_24 : i32
    scf.if %31 {
      %c0_25 = arith.constant 0 : index
      %c0_26 = arith.constant 0 : index
      %32 = vector.load %arg7[%c0_25, %c0_26] : memref<8x32xf32, #tpu.memory_space<vmem>>, vector<8x32xf32>
      %c0_27 = arith.constant 0 : index
      %c0_28 = arith.constant 0 : index
      %c0_29 = arith.constant 0 : index
      %33 = vector.load %arg6[%c0_27, %c0_28, %c0_29] : memref<1x8x32xf32, #tpu.memory_space<vmem>>, vector<1x8x32xf32>
      %34 = vector.shape_cast %33 : vector<1x8x32xf32> to vector<8x32xf32>
      %35 = vector.shape_cast %32 : vector<8x32xf32> to vector<1x8x32xf32>
      tpu.vector_store %arg6[%c0_27, %c0_28, %c0_29], %35 {strides = array<i32>} : memref<1x8x32xf32, #tpu.memory_space<vmem>>, vector<1x8x32xf32>,
    } else {
    }
    return
  }
  func.func @transform_0(%arg0: i32, %arg1: i32) -> (i32, i32, i32, i32) {
    %c0_i32 = arith.constant 0 : i32
    %c0_i32_0 = arith.constant 0 : i32
    %c0_i32_1 = arith.constant 0 : i32
    return %arg0, %arg1, %c0_i32, %c0_i32_0 : i32, i32, i32, i32
  }
  func.func @transform_1(%arg0: i32, %arg1: i32) -> (i32, i32, i32, i32) {
    %c0_i32 = arith.constant 0 : i32
    %c0_i32_0 = arith.constant 0 : i32
    %c0_i32_1 = arith.constant 0 : i32
    return %arg0, %arg1, %c0_i32, %c0_i32_0 : i32, i32, i32, i32
  }
  func.func @transform_2(%arg0: i32, %arg1: i32) -> (i32, i32, i32, i32) {
    %c0_i32 = arith.constant 0 : i32
    %c0_i32_0 = arith.constant 0 : i32
    %c0_i32_1 = arith.constant 0 : i32
    return %arg0, %arg1, %c0_i32, %c0_i32_0 : i32, i32, i32, i32
  }
  func.func @transform_3(%arg0: i32, %arg1: i32) -> (i32, i32, i32) {
    %c0_i32 = arith.constant 0 : i32
    %c0_i32_0 = arith.constant 0 : i32
    %c0_i32_1 = arith.constant 0 : i32
    return %arg1, %c0_i32, %c0_i32_0 : i32, i32, i32
  }
  func.func @transform_4(%arg0: i32, %arg1: i32) -> (i32, i32, i32) {
    %c0_i32 = arith.constant 0 : i32
    %c0_i32_0 = arith.constant 0 : i32
    %c0_i32_1 = arith.constant 0 : i32
    return %arg0, %c0_i32, %c0_i32_0 : i32, i32, i32
  }
}

</mosaic_0001>

<llo_original>
// kernel: attention_forward.2
$region0: #{attention_forward.2}
  #allocation0 [shape = 'u32[]', space=smem, size = 0x4, offset = 0x4, fixed_abs, tag = 'smem constant byte address 0x4 - core index']
  #allocation1 [shape = 'u32[72,128]{1,0:T(1,128)}', space=vmem, size = 0x9000, scoped, tag = 'internal scratch']
  %s0 = inlined_call_operand.vmem [shape: f32[16,32], index: 0, kind: input, shape index: {}]
  %s1 = inlined_call_operand.vmem [shape: f32[32,64], index: 1, kind: input, shape index: {}]
  %s2 = inlined_call_operand.vmem [shape: f32[32,64], index: 2, kind: input, shape index: {}]
  %s3 = inlined_call_operand.vmem [shape: f32[32,64], index: 3, kind: input, shape index: {}]
  %s4 = inlined_call_operand.vmem [shape: f32[16,64], index: 4, kind: output, shape index: {0}]
  %s5 = inlined_call_operand.vmem [shape: f32[16,64], index: 5, kind: output, shape index: {1}]
  %s6 = inlined_call_operand.vmem [shape: f32[16,64], index: 6, kind: output, shape index: {2}]
  %7 = xla_tuple %s4, %s5, %s6
  %s8 = sld [smem:[#allocation0]]
  $region42: #{attention_forward.2} parent=0
    _
  %s10 = ssub.s32 1, %s8
  %s11 = scalar_select 0, %s10, %s8
  // Predicated region
  $region2: #{attention_forward.2} parent=0 // pred_check
    _
  $region3: #{attention_forward.2} parent=0 // pred_check_branch
    %13 = sbr.rel (0) target = $region5
  $region4: #{attention_forward.2} parent=0 // pred_region
    _
  $region5: #{attention_forward.2} parent=0 // pred_fallthru
    _
  // Predicated region
  $region6: #{attention_forward.2} parent=0 // pred_check
    _
  $region7: #{attention_forward.2} parent=0 // pred_check_branch
    %15 = sbr.rel (0) target = $region9
  $region8: #{attention_forward.2} parent=0 // pred_region
    _
  $region9: #{attention_forward.2} parent=0 // pred_fallthru
    _
  // Predicated region
  $region10: #{attention_forward.2} parent=0 // pred_check
    _
  $region11: #{attention_forward.2} parent=0 // pred_check_branch
    %17 = sbr.rel (0) target = $region13
  $region12: #{attention_forward.2} parent=0 // pred_region
    _
  $region13: #{attention_forward.2} parent=0 // pred_fallthru
    _
  // Predicated region
  $region14: #{attention_forward.2} parent=0 // pred_check
    _
  $region15: #{attention_forward.2} parent=0 // pred_check_branch
    %19 = sbr.rel (0) target = $region17
  $region16: #{attention_forward.2} parent=0 // pred_region
    _
  $region17: #{attention_forward.2} parent=0 // pred_fallthru
    _
  %v20 = vld [vmem:[%s0] sm:$0xff]
  %v21 = vld [vmem:[%s0 + $0x8] sm:$0xff]
  %v22 = vld [vmem:[%s1] sm:$0xff]
  %v23 = vld [vmem:[%s1 + $0x8] sm:$0xff]
  %v24 = vld [vmem:[%s1 + $0x10] sm:$0xff]
  %v25 = vld [vmem:[%s1 + $0x18] sm:$0xff]
  %vm26 = vcmask 261120
  %v28 = vsel %vm26, %v20, 0
  %v31 = vsel %vm26, %v21, 0
  %33 = vmatpush.msra.mxu0 0.0
  %34 = vmatpush.msra.mxu0 0.0
  %35 = vmatpush.msra.mxu0 0.0
  %36 = vmatpush.msra.mxu0 0.0
  %37 = vmatpush.msra.mxu0 0.0
  %38 = vmatpush.msra.mxu0 0.0
  %39 = vmatpush.msra.mxu0 0.0
  %40 = vmatpush.msra.mxu0 0.0
  %41 = vmatpush.msra.mxu0 0.0
  %42 = vmatpush.msra.mxu0 0.0
  %43 = vmatpush.msra.mxu0 0.0
  %44 = vmatpush.msra.mxu0 0.0
  %45 = vmatpush.msra.mxu0 %v25
  %46 = vmatpush.msra.mxu0 %v24
  %47 = vmatpush.msra.mxu0 %v23
  %48 = vmatpush.msra.mxu0 %v22
  %49 = vmatmul.f32.gmra.mxu0 %v28
  %v50 = vpop.f32.mrf.mxu0
  %v51 = vadd.f32 0.0, %v50
  %52 = vmatmul.f32.gmra.mxu0 %v31
  %v53 = vpop.f32.mrf.mxu0
  %v54 = vadd.f32 0.0, %v53
  %55 = vdwg.mxu0
  %vm56 = vcmask 523264
  %57 = vst.msk [vmem:[%s4] sm:$0xff] %vm56, %v51
  %58 = vst.msk [vmem:[%s4 + $0x8] sm:$0xff] %vm56, %v54
  %v59 = vld [vmem:[%s2] sm:$0xff]
  %v60 = vld [vmem:[%s2 + $0x8] sm:$0xff]
  %v61 = vld [vmem:[%s2 + $0x10] sm:$0xff]
  %v62 = vld [vmem:[%s2 + $0x18] sm:$0xff]
  %63 = vmatpush.msra.mxu0 0.0
  %64 = vmatpush.msra.mxu0 0.0
  %65 = vmatpush.msra.mxu0 0.0
  %66 = vmatpush.msra.mxu0 0.0
  %67 = vmatpush.msra.mxu0 0.0
  %68 = vmatpush.msra.mxu0 0.0
  %69 = vmatpush.msra.mxu0 0.0
  %70 = vmatpush.msra.mxu0 0.0
  %71 = vmatpush.msra.mxu0 0.0
  %72 = vmatpush.msra.mxu0 0.0
  %73 = vmatpush.msra.mxu0 0.0
  %74 = vmatpush.msra.mxu0 0.0
  %75 = vmatpush.msra.mxu0 %v62
  %76 = vmatpush.msra.mxu0 %v61
  %77 = vmatpush.msra.mxu0 %v60
  %78 = vmatpush.msra.mxu0 %v59
  %79 = vmatmul.f32.gmra.mxu0 %v28
  %v80 = vpop.f32.mrf.mxu0
  %v81 = vadd.f32 0.0, %v80
  %82 = vmatmul.f32.gmra.mxu0 %v31
  %v83 = vpop.f32.mrf.mxu0
  %v84 = vadd.f32 0.0, %v83
  %85 = vdwg.mxu0
  %86 = vst.msk [vmem:[%s5] sm:$0xff] %vm56, %v81
  %87 = vst.msk [vmem:[%s5 + $0x8] sm:$0xff] %vm56, %v84
  %v88 = vld [vmem:[%s3] sm:$0xff]
  %v89 = vld [vmem:[%s3 + $0x8] sm:$0xff]
  %v90 = vld [vmem:[%s3 + $0x10] sm:$0xff]
  %v91 = vld [vmem:[%s3 + $0x18] sm:$0xff]
  %92 = vmatpush.msra.mxu0 0.0
  %93 = vmatpush.msra.mxu0 0.0
  %94 = vmatpush.msra.mxu0 0.0
  %95 = vmatpush.msra.mxu0 0.0
  %96 = vmatpush.msra.mxu0 0.0
  %97 = vmatpush.msra.mxu0 0.0
  %98 = vmatpush.msra.mxu0 0.0
  %99 = vmatpush.msra.mxu0 0.0
  %100 = vmatpush.msra.mxu0 0.0
  %101 = vmatpush.msra.mxu0 0.0
  %102 = vmatpush.msra.mxu0 0.0
  %103 = vmatpush.msra.mxu0 0.0
  %104 = vmatpush.msra.mxu0 %v91
  %105 = vmatpush.msra.mxu0 %v90
  %106 = vmatpush.msra.mxu0 %v89
  %107 = vmatpush.msra.mxu0 %v88
  %108 = vmatmul.f32.gmra.mxu0 %v28
  %v109 = vpop.f32.mrf.mxu0
  %v110 = vadd.f32 0.0, %v109
  %111 = vmatmul.f32.gmra.mxu0 %v31
  %v112 = vpop.f32.mrf.mxu0
  %v113 = vadd.f32 0.0, %v112
  %114 = vdwg.mxu0
  %115 = vst.msk [vmem:[%s6] sm:$0xff] %vm56, %v110
  %116 = vst.msk [vmem:[%s6 + $0x8] sm:$0xff] %vm56, %v113
  // Predicated region
  $region18: #{attention_forward.2} parent=0 // pred_check
    _
  $region19: #{attention_forward.2} parent=0 // pred_check_branch
    %118 = sbr.rel (0) target = $region21
  $region20: #{attention_forward.2} parent=0 // pred_region
    _
  $region21: #{attention_forward.2} parent=0 // pred_fallthru
    _
  // Predicated region
  $region22: #{attention_forward.2} parent=0 // pred_check
    _
  $region23: #{attention_forward.2} parent=0 // pred_check_branch
    %120 = sbr.rel (0) target = $region25
  $region24: #{attention_forward.2} parent=0 // pred_region
    _
  $region25: #{attention_forward.2} parent=0 // pred_fallthru
    _
  // Predicated region
  $region26: #{attention_forward.2} parent=0 // pred_check
    _
  $region27: #{attention_forward.2} parent=0 // pred_check_branch
    %122 = sbr.rel (0) target = $region29
  $region28: #{attention_forward.2} parent=0 // pred_region
    _
  $region29: #{attention_forward.2} parent=0 // pred_fallthru
    _
  // Predicated region
  $region30: #{attention_forward.2} parent=0 // pred_check
    _
  $region31: #{attention_forward.2} parent=0 // pred_check_branch
    %124 = sbr.rel (0) target = $region33
  $region32: #{attention_forward.2} parent=0 // pred_region
    _
  $region33: #{attention_forward.2} parent=0 // pred_fallthru
    _
  // Predicated region
  $region34: #{attention_forward.2} parent=0 // pred_check
    _
  $region35: #{attention_forward.2} parent=0 // pred_check_branch
    %126 = sbr.rel (0) target = $region37
  $region36: #{attention_forward.2} parent=0 // pred_region
    _
  $region37: #{attention_forward.2} parent=0 // pred_fallthru
    _
  // Predicated region
  $region38: #{attention_forward.2} parent=0 // pred_check
    _
  $region39: #{attention_forward.2} parent=0 // pred_check_branch
    %128 = sbr.rel (0) target = $region41
  $region40: #{attention_forward.2} parent=0 // pred_region
    _
  $region41: #{attention_forward.2} parent=0 // pred_fallthru
    _

// kernel: attention_forward.3
$region0: #{attention_forward.3}
  #allocation0 [shape = 'u32[]', space=smem, size = 0x4, offset = 0x4, fixed_abs, tag = 'smem constant byte address 0x4 - core index']
  #allocation1 [shape = 'u32[72,128]{1,0:T(1,128)}', space=vmem, size = 0x9000, scoped, tag = 'internal scratch']
  #allocation2 [shape = 'f32[8,32]{1,0:T(8,128)}', space=vmem, size = 0x1000, scoped, tag = 'scratch operand']
  %s0 = inlined_call_operand.vmem [shape: f32[2,4,8,16], index: 0, kind: input, shape index: {}]
  %s1 = inlined_call_operand.vmem [shape: f32[2,4,8,16], index: 1, kind: input, shape index: {}]
  %s2 = inlined_call_operand.vmem [shape: f32[2,4,8,16], index: 2, kind: input, shape index: {}]
  %s3 = inlined_call_operand.vmem [shape: f32[4,16,32], index: 3, kind: input, shape index: {}]
  %s4 = inlined_call_operand.hbm [shape: f32[2,8,32], index: 4, kind: output, shape index: {}]
  %s5 = sld [smem:[#allocation0]]
  $region57: #{attention_forward.3} parent=0
    _
  %s7 = ssub.s32 1, %s5
  %s8 = scalar_select 0, %s7, %s5
  $region1: #{attention_forward.3} parent=0
    #allocation3 [shape = 'u8[8192]{0}', space=vmem, size = 0x2000, scoped, tag = 'output window, operand 0']
    #allocation4 [shape = 's32[2]{0}', space=sflag, size = 0x8, scoped, tag = 'scoped memory for attention_forward.3']
    %9 = vsyncpa [#allocation4], 0
    %s10 = scalar_lea.sflag [#allocation4], 1
    %11 = vsyncpa %s10, 0
    loop: start=0, step=1, limit=10
    $region2: #{attention_forward.3} parent=1 // loop_pre_header
      _
    $region3: #{attention_forward.3} parent=1 // loop_header
      %s13 = sphi 0, %s17
      %p14 = scmp.ge.s32.totalorder %s13, 10
      %s20 = sphi 0, %s32
      %s21 = sphi 0, %s28
      %s22 = sphi 0, %s20
      %s23 = sphi 0, %s21
      %s24 = sphi 0, %s22
      %s25 = sphi 0, %s23
      %s37 = sphi 0, %s39
      %s40 = sphi 0, %s37
      %s41 = sphi 0, %s40
      %s57 = sphi 0, %s41
      %s65 = sphi 0, %s67
      %s68 = sphi 0, %s65
      %s69 = sphi 0, %s68
      %s85 = sphi 0, %s69
      %s93 = sphi 0, %s95
      %s96 = sphi 0, %s93
      %s97 = sphi 0, %s96
      %s113 = sphi 0, %s97
      %s119 = sphi 0, %s121
      %s122 = sphi 0, %s119
      %s123 = sphi 0, %s122
      %s139 = sphi 0, %s123
      %s145 = sphi 0, %s147
      %s148 = sphi 0, %s145
      %s149 = sphi 0, %s148
      %s165 = sphi 0, %s149
    $region4: #{attention_forward.3} parent=1 // loop_header_branch
      %16 = sbr.rel (%p14) target = $region8
    $region5: #{attention_forward.3} parent=1 // loop_body
      %s18 = ssub.s32 %s13, 1
      %s19 = ssub.s32 %s13, 2
      %s26 = sadd.s32 1, %s21
      %p27 = scmp.ge.s32.totalorder %s26, 4
      %s28 = scalar_select %p27, 0, %s26
      %s29 = sadd.s32 1, %s20
      %s30 = scalar_select %p27, %s29, %s20
      %p31 = scmp.ge.s32.totalorder %s30, 2
      %s32 = scalar_select %p31, 0, %s30
      %s33 = ssub.s32 %s20, %s32
      %s34 = ssub.s32 %s21, %s28
      %s35 = sor.u32 %s33, %s34
      %p36 = scmp.eq.s32.totalorder %s35, 0
      %s38 = sadd.s32 %s37, 1
      %s39 = scalar_select %p36, %s37, %s38
      %p42 = pneg %p36
      %p43 = scmp.eq.s32.totalorder %s13, 7
      %p44 = por %p42, %p43
      %p45 = scmp.ne.s32.totalorder %s37, %s40
      %p46 = scmp.eq.s32.totalorder %s13, 0
      %p47 = por %p45, %p46
      %p48 = scmp.ne.s32.totalorder %s37, %s40
      %p49 = scmp.eq.s32.totalorder %s18, 7
      %p50 = por %p48, %p49
      %p51 = scmp.ne.s32.totalorder %s40, %s41
      %p52 = scmp.eq.s32.totalorder %s18, 0
      %p53 = por %p51, %p52
      %p54 = scmp.ne.s32.totalorder %s40, %s41
      %p55 = scmp.eq.s32.totalorder %s19, 7
      %p56 = por %p54, %p55
      %p58 = scmp.ne.s32.totalorder %s41, %s57
      %p59 = scmp.eq.s32.totalorder %s19, 0
      %p60 = por %p58, %p59
      %s61 = ssub.s32 %s20, %s32
      %s62 = ssub.s32 %s21, %s28
      %s63 = sor.u32 %s61, %s62
      %p64 = scmp.eq.s32.totalorder %s63, 0
      %s66 = sadd.s32 %s65, 1
      %s67 = scalar_select %p64, %s65, %s66
      %p70 = pneg %p64
      %p71 = scmp.eq.s32.totalorder %s13, 7
      %p72 = por %p70, %p71
      %p73 = scmp.ne.s32.totalorder %s65, %s68
      %p74 = scmp.eq.s32.totalorder %s13, 0
      %p75 = por %p73, %p74
      %p76 = scmp.ne.s32.totalorder %s65, %s68
      %p77 = scmp.eq.s32.totalorder %s18, 7
      %p78 = por %p76, %p77
      %p79 = scmp.ne.s32.totalorder %s68, %s69
      %p80 = scmp.eq.s32.totalorder %s18, 0
      %p81 = por %p79, %p80
      %p82 = scmp.ne.s32.totalorder %s68, %s69
      %p83 = scmp.eq.s32.totalorder %s19, 7
      %p84 = por %p82, %p83
      %p86 = scmp.ne.s32.totalorder %s69, %s85
      %p87 = scmp.eq.s32.totalorder %s19, 0
      %p88 = por %p86, %p87
      %s89 = ssub.s32 %s20, %s32
      %s90 = ssub.s32 %s21, %s28
      %s91 = sor.u32 %s89, %s90
      %p92 = scmp.eq.s32.totalorder %s91, 0
      %s94 = sadd.s32 %s93, 1
      %s95 = scalar_select %p92, %s93, %s94
      %p98 = pneg %p92
      %p99 = scmp.eq.s32.totalorder %s13, 7
      %p100 = por %p98, %p99
      %p101 = scmp.ne.s32.totalorder %s93, %s96
      %p102 = scmp.eq.s32.totalorder %s13, 0
      %p103 = por %p101, %p102
      %p104 = scmp.ne.s32.totalorder %s93, %s96
      %p105 = scmp.eq.s32.totalorder %s18, 7
      %p106 = por %p104, %p105
      %p107 = scmp.ne.s32.totalorder %s96, %s97
      %p108 = scmp.eq.s32.totalorder %s18, 0
      %p109 = por %p107, %p108
      %p110 = scmp.ne.s32.totalorder %s96, %s97
      %p111 = scmp.eq.s32.totalorder %s19, 7
      %p112 = por %p110, %p111
      %p114 = scmp.ne.s32.totalorder %s97, %s113
      %p115 = scmp.eq.s32.totalorder %s19, 0
      %p116 = por %p114, %p115
      %s117 = ssub.s32 %s21, %s28
      %p118 = scmp.eq.s32.totalorder %s117, 0
      %s120 = sadd.s32 %s119, 1
      %s121 = scalar_select %p118, %s119, %s120
      %p124 = pneg %p118
      %p125 = scmp.eq.s32.totalorder %s13, 7
      %p126 = por %p124, %p125
      %p127 = scmp.ne.s32.totalorder %s119, %s122
      %p128 = scmp.eq.s32.totalorder %s13, 0
      %p129 = por %p127, %p128
      %p130 = scmp.ne.s32.totalorder %s119, %s122
      %p131 = scmp.eq.s32.totalorder %s18, 7
      %p132 = por %p130, %p131
      %p133 = scmp.ne.s32.totalorder %s122, %s123
      %p134 = scmp.eq.s32.totalorder %s18, 0
      %p135 = por %p133, %p134
      %p136 = scmp.ne.s32.totalorder %s122, %s123
      %p137 = scmp.eq.s32.totalorder %s19, 7
      %p138 = por %p136, %p137
      %p140 = scmp.ne.s32.totalorder %s123, %s139
      %p141 = scmp.eq.s32.totalorder %s19, 0
      %p142 = por %p140, %p141
      %s143 = ssub.s32 %s20, %s32
      %p144 = scmp.eq.s32.totalorder %s143, 0
      %s146 = sadd.s32 %s145, 1
      %s147 = scalar_select %p144, %s145, %s146
      %p150 = pneg %p144
      %p151 = scmp.eq.s32.totalorder %s13, 7
      %p152 = por %p150, %p151
      %p153 = scmp.ne.s32.totalorder %s145, %s148
      %p154 = scmp.eq.s32.totalorder %s13, 0
      %p155 = por %p153, %p154
      %p156 = scmp.ne.s32.totalorder %s145, %s148
      %p157 = scmp.eq.s32.totalorder %s18, 7
      %p158 = por %p156, %p157
      %p159 = scmp.ne.s32.totalorder %s148, %s149
      %p160 = scmp.eq.s32.totalorder %s18, 0
      %p161 = por %p159, %p160
      %p162 = scmp.ne.s32.totalorder %s148, %s149
      %p163 = scmp.eq.s32.totalorder %s19, 7
      %p164 = por %p162, %p163
      %p166 = scmp.ne.s32.totalorder %s149, %s165
      %p167 = scmp.eq.s32.totalorder %s19, 0
      %p168 = por %p166, %p167
      %p169 = scmp.le.s32.totalorder 1, %s13
      %p170 = scmp.lt.s32.totalorder %s13, 9
      %p171 = pnand %p169, %p170
      %p172 = pneg %p171
      // Predicated region
      $region9: #{attention_forward.3} parent=5 // pred_check
        _
      $region10: #{attention_forward.3} parent=5 // pred_check_branch
        %174 = sbr.rel (%p171) target = $region12
      $region11: #{attention_forward.3} parent=5 // pred_region
        %s175 = ssub.s32 %s13, 1
      $region12: #{attention_forward.3} parent=5 // pred_fallthru
        _
      %p176 = scmp.lt.s32.totalorder %s13, 8
      // Predicated region
      $region13: #{attention_forward.3} parent=5 // pred_check
        %p177 = pneg %p176
      $region14: #{attention_forward.3} parent=5 // pred_check_branch
        %179 = sbr.rel (%p177) target = $region16
      $region15: #{attention_forward.3} parent=5 // pred_region
        // Predicated region
        $region17: #{attention_forward.3} parent=15 // pred_check
          %p180 = pneg %p47
        $region18: #{attention_forward.3} parent=15 // pred_check_branch
          %182 = sbr.rel (%p180) target = $region20
        $region19: #{attention_forward.3} parent=15 // pred_region
          %p183 = scmp.lt.s32.totalorder %s20, 1
          %s184 = scalar_select %p183, %s20, 1
          %p185 = scmp.lt.s32.totalorder %s21, 3
          %s186 = scalar_select %p185, %s21, 3
          %s187 = smul.addr %s184, 4
          %s188 = sadd.s32 %s186, %s187
          %s189 = smul.addr %s188, 8
          %s190 = scalar_lea.vmem %s0, %s189
        $region20: #{attention_forward.3} parent=15 // pred_fallthru
          _
        // Predicated region
        $region21: #{attention_forward.3} parent=15 // pred_check
          %p191 = pneg %p75
        $region22: #{attention_forward.3} parent=15 // pred_check_branch
          %193 = sbr.rel (%p191) target = $region24
        $region23: #{attention_forward.3} parent=15 // pred_region
          %p194 = scmp.lt.s32.totalorder %s20, 1
          %s195 = scalar_select %p194, %s20, 1
          %p196 = scmp.lt.s32.totalorder %s21, 3
          %s197 = scalar_select %p196, %s21, 3
          %s198 = smul.addr %s195, 4
          %s199 = sadd.s32 %s197, %s198
          %s200 = smul.addr %s199, 8
          %s201 = scalar_lea.vmem %s1, %s200
        $region24: #{attention_forward.3} parent=15 // pred_fallthru
          _
        // Predicated region
        $region25: #{attention_forward.3} parent=15 // pred_check
          %p202 = pneg %p103
        $region26: #{attention_forward.3} parent=15 // pred_check_branch
          %204 = sbr.rel (%p202) target = $region28
        $region27: #{attention_forward.3} parent=15 // pred_region
          %p205 = scmp.lt.s32.totalorder %s20, 1
          %s206 = scalar_select %p205, %s20, 1
          %p207 = scmp.lt.s32.totalorder %s21, 3
          %s208 = scalar_select %p207, %s21, 3
          %s209 = smul.addr %s206, 4
          %s210 = sadd.s32 %s208, %s209
          %s211 = smul.addr %s210, 8
          %s212 = scalar_lea.vmem %s2, %s211
        $region28: #{attention_forward.3} parent=15 // pred_fallthru
          _
        // Predicated region
        $region29: #{attention_forward.3} parent=15 // pred_check
          %p213 = pneg %p129
        $region30: #{attention_forward.3} parent=15 // pred_check_branch
          %215 = sbr.rel (%p213) target = $region32
        $region31: #{attention_forward.3} parent=15 // pred_region
          %p216 = scmp.lt.s32.totalorder %s21, 3
          %s217 = scalar_select %p216, %s21, 3
          %s218 = smul.addr %s217, 2
          %s219 = smul.addr %s218, 8
          %s220 = scalar_lea.vmem %s3, %s219
        $region32: #{attention_forward.3} parent=15 // pred_fallthru
          _
      $region16: #{attention_forward.3} parent=5 // pred_fallthru
        _
      %p221 = scmp.le.s32.totalorder 1, %s13
      %p222 = scmp.lt.s32.totalorder %s13, 9
      %p223 = pnand %p221, %p222
      %p224 = pneg %p223
      // Predicated region
      $region33: #{attention_forward.3} parent=5 // pred_check
        _
      $region34: #{attention_forward.3} parent=5 // pred_check_branch
        %226 = sbr.rel (%p223) target = $region36
      $region35: #{attention_forward.3} parent=5 // pred_region
        %s227 = ssub.s32 %s13, 1
        %p228 = scmp.lt.s32.totalorder %s22, 1
        %s229 = scalar_select %p228, %s22, 1
        %p230 = scmp.lt.s32.totalorder %s23, 3
        %s231 = scalar_select %p230, %s23, 3
        %s232 = smul.addr %s229, 4
        %s233 = sadd.s32 %s231, %s232
        %s234 = smul.addr %s233, 8
        %s235 = scalar_lea.vmem %s0, %s234
        %p236 = pneg %p53
        %p237 = pneg %p50
        %p238 = scmp.lt.s32.totalorder %s22, 1
        %s239 = scalar_select %p238, %s22, 1
        %p240 = scmp.lt.s32.totalorder %s23, 3
        %s241 = scalar_select %p240, %s23, 3
        %s242 = smul.addr %s239, 4
        %s243 = sadd.s32 %s241, %s242
        %s244 = smul.addr %s243, 8
        %s245 = scalar_lea.vmem %s1, %s244
        %p246 = pneg %p81
        %p247 = pneg %p78
        %p248 = scmp.lt.s32.totalorder %s22, 1
        %s249 = scalar_select %p248, %s22, 1
        %p250 = scmp.lt.s32.totalorder %s23, 3
        %s251 = scalar_select %p250, %s23, 3
        %s252 = smul.addr %s249, 4
        %s253 = sadd.s32 %s251, %s252
        %s254 = smul.addr %s253, 8
        %s255 = scalar_lea.vmem %s2, %s254
        %p256 = pneg %p109
        %p257 = pneg %p106
        %p258 = scmp.lt.s32.totalorder %s23, 3
        %s259 = scalar_select %p258, %s23, 3
        %s260 = smul.addr %s259, 2
        %s261 = smul.addr %s260, 8
        %s262 = scalar_lea.vmem %s3, %s261
        %p263 = pneg %p135
        %p264 = pneg %p132
        %p265 = pneg %p161
        %p266 = pneg %p158
        %s267 = sand.u32 %s148, 1
        %s268 = scalar_lea.sflag [#allocation4], %s267
        %s269 = sand.u32 %s148, 1
        %s270 = smul.addr %s269, 8
        %s271 = scalar_lea.vmem [#allocation3], %s270
        %p272 = scmp.lt.s32.totalorder %s22, 1
        %s273 = scalar_select %p272, %s22, 1
        %p274 = scmp.lt.s32.totalorder %s23, 3
        %s275 = scalar_select %p274, %s23, 3
        %s276 = smul.addr %s273, 4
        %s277 = sadd.s32 %s275, %s276
        %s278 = smul.addr %s277, 8
        %s279 = scalar_lea.vmem %s0, %s278
        %p280 = scmp.lt.s32.totalorder %s22, 1
        %s281 = scalar_select %p280, %s22, 1
        %p282 = scmp.lt.s32.totalorder %s23, 3
        %s283 = scalar_select %p282, %s23, 3
        %s284 = smul.addr %s281, 4
        %s285 = sadd.s32 %s283, %s284
        %s286 = smul.addr %s285, 8
        %s287 = scalar_lea.vmem %s1, %s286
        %p288 = scmp.lt.s32.totalorder %s22, 1
        %s289 = scalar_select %p288, %s22, 1
        %p290 = scmp.lt.s32.totalorder %s23, 3
        %s291 = scalar_select %p290, %s23, 3
        %s292 = smul.addr %s289, 4
        %s293 = sadd.s32 %s291, %s292
        %s294 = smul.addr %s293, 8
        %s295 = scalar_lea.vmem %s2, %s294
        %p296 = scmp.lt.s32.totalorder %s23, 3
        %s297 = scalar_select %p296, %s23, 3
        %s298 = smul.addr %s297, 2
        %s299 = smul.addr %s298, 8
        %s300 = scalar_lea.vmem %s3, %s299
        %p301 = scmp.eq.s32.totalorder %s23, 0
        // Predicated region
        $region37: #{attention_forward.3} parent=35 // pred_check
          %p302 = pneg %p301
        $region38: #{attention_forward.3} parent=35 // pred_check_branch
          %304 = sbr.rel (%p302) target = $region40
        $region39: #{attention_forward.3} parent=35 // pred_region
          %vm305 = vcmask 261120
          %306 = vst.msk [vmem:[#allocation2] sm:$0xff] %vm305, 0.0
        $region40: #{attention_forward.3} parent=35 // pred_fallthru
          _
        %v307 = vld [vmem:[%s279] sm:$0xff]
        %v308 = vld [vmem:[%s287] sm:$0xff]
        %v309 = vld [vmem:[%s295] sm:$0xff]
        %v310 = vld [vmem:[%s300] sm:$0xff]
        %v311 = vld [vmem:[%s300 + $0x8] sm:$0xff]
        %vm312 = vcmask 130048
        %v314 = vsel %vm312, %v307, 0
        %v317 = vsel %vm312, %v308, 0
        %319 = vmatpush.xpose.msra.mxu0 0.0
        %320 = vmatpush.xpose.msra.mxu0 0.0
        %321 = vmatpush.xpose.msra.mxu0 0.0
        %322 = vmatpush.xpose.msra.mxu0 0.0
        %323 = vmatpush.xpose.msra.mxu0 0.0
        %324 = vmatpush.xpose.msra.mxu0 0.0
        %325 = vmatpush.xpose.msra.mxu0 0.0
        %326 = vmatpush.xpose.msra.mxu0 0.0
        %327 = vmatpush.xpose.msra.mxu0 0.0
        %328 = vmatpush.xpose.msra.mxu0 0.0
        %329 = vmatpush.xpose.msra.mxu0 0.0
        %330 = vmatpush.xpose.msra.mxu0 0.0
        %331 = vmatpush.xpose.msra.mxu0 0.0
        %332 = vmatpush.xpose.msra.mxu0 0.0
        %333 = vmatpush.xpose.msra.mxu0 0.0
        %334 = vmatpush.xpose.msra.mxu0 %v317
        %335 = vmatmul.f32.gmra.mxu0 %v314
        %v336 = vpop.f32.mrf.mxu0
        %v337 = vadd.f32 0.0, %v336
        %338 = vdwg.mxu0
        %v339 = vmul.f32 %v337, 0.25
        %vm340 = vcmask 64512
        %v341 = vsel %vm340, %v339, -inf
        %342 = vmax.xlane.f32.xlu0 %v341
        %v343 = vpop.xlane.xlu0 %342
        %v344 = vsub.f32 %v339, %v343
        %v345 = vmul.f32 %v344, 1.442695
        %v346 = vpow.pop %v345
        %v347 = vsel %vm340, %v346, 0.0
        %348 = vadd.xlane.f32.xlu0 %v347
        %v349 = vpop.xlane.xlu0 %348
        %v350 = vrcp.pop %v349
        %v351 = vmul.f32 %v346, %v350
        %v353 = vsel %vm340, %v351, 0
        %355 = vmatpush.msra.mxu0 0.0
        %356 = vmatpush.msra.mxu0 0.0
        %357 = vmatpush.msra.mxu0 0.0
        %358 = vmatpush.msra.mxu0 0.0
        %359 = vmatpush.msra.mxu0 0.0
        %360 = vmatpush.msra.mxu0 0.0
        %361 = vmatpush.msra.mxu0 0.0
        %362 = vmatpush.msra.mxu0 0.0
        %363 = vmatpush.msra.mxu0 0.0
        %364 = vmatpush.msra.mxu0 0.0
        %365 = vmatpush.msra.mxu0 0.0
        %366 = vmatpush.msra.mxu0 0.0
        %367 = vmatpush.msra.mxu0 0.0
        %368 = vmatpush.msra.mxu0 0.0
        %369 = vmatpush.msra.mxu0 0.0
        %370 = vmatpush.msra.mxu0 %v309
        %371 = vmatmul.f32.gmra.mxu0 %v353
        %v372 = vpop.f32.mrf.mxu0
        %v373 = vadd.f32 0.0, %v372
        %374 = vdwg.mxu0
        %v375 = vld [vmem:[#allocation2] sm:$0xff]
        %v377 = vsel %vm312, %v373, 0
        %379 = vmatpush.msra.mxu0 0.0
        %380 = vmatpush.msra.mxu0 0.0
        %381 = vmatpush.msra.mxu0 0.0
        %382 = vmatpush.msra.mxu0 0.0
        %383 = vmatpush.msra.mxu0 0.0
        %384 = vmatpush.msra.mxu0 0.0
        %385 = vmatpush.msra.mxu0 0.0
        %386 = vmatpush.msra.mxu0 0.0
        %387 = vmatpush.msra.mxu0 0.0
        %388 = vmatpush.msra.mxu0 0.0
        %389 = vmatpush.msra.mxu0 0.0
        %390 = vmatpush.msra.mxu0 0.0
        %391 = vmatpush.msra.mxu0 0.0
        %392 = vmatpush.msra.mxu0 0.0
        %393 = vmatpush.msra.mxu0 %v311
        %394 = vmatpush.msra.mxu0 %v310
        %395 = vmatmul.f32.gmra.mxu0 %v377
        %v396 = vpop.f32.mrf.mxu0
        %v397 = vadd.f32 0.0, %v396
        %398 = vdwg.mxu0
        %v399 = vadd.f32 %v375, %v397
        %vm400 = vcmask 261120
        %401 = vst.msk [vmem:[#allocation2] sm:$0xff] %vm400, %v399
        %p402 = scmp.eq.s32.totalorder %s23, 3
        // Predicated region
        $region41: #{attention_forward.3} parent=35 // pred_check
          %p403 = pneg %p402
        $region42: #{attention_forward.3} parent=35 // pred_check_branch
          %405 = sbr.rel (%p403) target = $region44
        $region43: #{attention_forward.3} parent=35 // pred_region
          %v406 = vld [vmem:[#allocation2] sm:$0xff]
          %407 = vst.msk [vmem:[%s271] sm:$0xff] %vm400, %v406
        $region44: #{attention_forward.3} parent=35 // pred_fallthru
          _
        %s408 = sand.u32 %s148, 1
        %s409 = scalar_lea.sflag [#allocation4], %s408
        %s410 = sand.u32 %s148, 1
        %s411 = smul.addr %s410, 8
        %s412 = scalar_lea.vmem [#allocation3], %s411
        // Predicated region
        $region45: #{attention_forward.3} parent=35 // pred_check
          %p413 = pneg %p158
        $region46: #{attention_forward.3} parent=35 // pred_check_branch
          %415 = sbr.rel (%p413) target = $region48
        $region47: #{attention_forward.3} parent=35 // pred_region
          %417 = vsyncadd %s409, 0
          %s418 = smul.addr %s22, 8
          %s419 = scalar_lea.hbm %s4, %s418
          %s421 = sshll.u32 %s412, 4
          %s422 = int_to_ptr.vmem [resolvable:$true] %s421
          %s423 = sshll.u32 %s419, 4
          %s424 = int_to_ptr.hbm [resolvable:$true] %s423
          %426 = dma.vmem_to_hbm [thread:$0]  %s422, 128, %s424, %s409
        $region48: #{attention_forward.3} parent=35 // pred_fallthru
          _
      $region36: #{attention_forward.3} parent=5 // pred_fallthru
        _
      %p427 = scmp.le.s32.totalorder 2, %s13
      // Predicated region
      $region49: #{attention_forward.3} parent=5 // pred_check
        %p428 = pneg %p427
      $region50: #{attention_forward.3} parent=5 // pred_check_branch
        %430 = sbr.rel (%p428) target = $region52
      $region51: #{attention_forward.3} parent=5 // pred_region
        %s431 = ssub.s32 %s13, 2
        // Predicated region
        $region53: #{attention_forward.3} parent=51 // pred_check
          %p432 = pneg %p164
        $region54: #{attention_forward.3} parent=51 // pred_check_branch
          %434 = sbr.rel (%p432) target = $region56
        $region55: #{attention_forward.3} parent=51 // pred_region
          %s435 = sand.u32 %s149, 1
          %s436 = scalar_lea.sflag [#allocation4], %s435
          %s437 = sand.u32 %s149, 1
          %s438 = smul.addr %s437, 8
          %s439 = scalar_lea.vmem [#allocation3], %s438
          %441 = dma.done %s436, 128
        $region56: #{attention_forward.3} parent=51 // pred_fallthru
          _
      $region52: #{attention_forward.3} parent=5 // pred_fallthru
        _
    $region6: #{attention_forward.3} parent=1 // loop_footer
      %s17 = sadd.s32 1, %s13
    $region7: #{attention_forward.3} parent=1 // loop_footer_branch
      %12 = sbr.rel target = $region3
    $region8: #{attention_forward.3} parent=1 // loop_exit
      _
    %442 = vsyncpa [#allocation4], 1
    %s443 = scalar_lea.sflag [#allocation4], 1
    %444 = vsyncpa %s443, 1

</llo_original>
